<compile_context>
chip_gen: v7x
topology: tpu7x:2x2x1
jax: 0.10.0
libtpu: 0.0.40
codegen_flags: <defaults>
</compile_context>

<pallas_src>
import numpy as np
import jax
import jax.numpy as jnp
from jax.experimental import pallas as pl
from jax.experimental.pallas import tpu as pltpu

# --- constants from pyCore.py ---
DEFAULT_LAMBDA_SIZE = 16
INSTR_INIT_WEIGHT_SCALE = 0.01
LAMBDA_INIT_WEIGHT_SCALE = 0.01
KA1_MULT = 0.5771816010184
MOKA1 = 0.709317
MOKA2 = 0.713607


# ----------------------------- Pallas kernel --------------------------------

def xrd_fused_kernel(y_ref, m_ref, o_ref, acc_ref):
    """out = y @ Mfused  (single bf16 MXU matvec, f32 accumulation).

    Grid: (n, k) — n tiles output columns ("parallel"), k tiles the
    contraction ("arbitrary", last). Accumulator lives in VMEM scratch across k.
    """
    k = pl.program_id(1)

    @pl.when(k == 0)
    def _():
        acc_ref[...] = jnp.zeros_like(acc_ref)

    acc_ref[...] += jnp.dot(y_ref[...], m_ref[...],
                            preferred_element_type=jnp.float32)

    @pl.when(k == pl.num_programs(1) - 1)
    def _():
        o_ref[...] = acc_ref[...].astype(o_ref.dtype)


def _tile(L, pref):
    """Largest lane-aligned (multiple of 128) tile <= pref that divides L; else L."""
    if L % 128 != 0:
        return L
    t = min(pref, L)
    t -= t % 128
    while t >= 128 and L % t != 0:
        t -= 128
    return t if t >= 128 else L


def xrd_forward_pallas(y, mfused, *, tn=256, tk=512):
    """y: (1, L) signal, mfused: (L, L) bf16 fused operator -> (1, L) f32."""
    L = mfused.shape[0]
    tn = _tile(L, tn)
    tk = _tile(L, tk)
    # Sublane-full 8-row input block: row 0 = signal, rows 1..7 zero.
    y8 = jnp.zeros((8, L), jnp.bfloat16).at[0, :].set(y[0].astype(jnp.bfloat16))
    grid = (L // tn, L // tk)
    out8 = pl.pallas_call(
        xrd_fused_kernel,
        out_shape=jax.ShapeDtypeStruct((8, L), jnp.float32),
        grid_spec=pltpu.PrefetchScalarGridSpec(
            num_scalar_prefetch=0,
            grid=grid,
            in_specs=[
                pl.BlockSpec((8, tk), lambda n, k: (0, k)),    # signal slice
                pl.BlockSpec((tk, tn), lambda n, k: (k, n)),   # fused-matrix tile
            ],
            out_specs=pl.BlockSpec((8, tn), lambda n, k: (0, n)),
            scratch_shapes=[pltpu.VMEM((8, tn), jnp.float32)],
        ),
        compiler_params=pltpu.CompilerParams(
            dimension_semantics=("parallel", "arbitrary"),
            vmem_limit_bytes=32 * 1024 * 1024),
    )(y8, mfused)
    return out8[0:1, :]


# ---------------- parameter / static-operator setup (plain JAX, runs once) ---

def interpolate_instr_weight(w, out_size):
    """InterpolatedConv._interp: piecewise-linear resample of the (in_size,) raw
    weight onto out_size points of [0, 1] (boundary-slope extrapolation)."""
    in_size = w.shape[0]
    xp = jnp.linspace(0.0, 1.0, in_size)
    xf = jnp.linspace(0.0, 1.0, out_size)
    m = (w[1:] - w[:-1]) / (xp[1:] - xp[:-1])
    b = w[:-1] - m * xp[:-1]
    idx = jnp.sum((xf[:, None] >= xp[None, :]).astype(jnp.int32), axis=1) - 1
    idx = jnp.clip(idx, 0, in_size - 2)
    return (m[idx] * xf + b[idx]).astype(jnp.float32)


def build_doublet_matrix(x_mesh, ka1=MOKA1, ka2=MOKA2):
    """LambdaConv doublet interp folded into an (L, L) matrix M s.t. doublet == y @ M
    (each interp row has <= 2 non-zeros)."""
    L = x_mesh.shape[0]
    # defensive clamp of arcsin argument
    arg = jnp.clip(ka2 * jnp.sin(jnp.deg2rad(0.5 * x_mesh)) / ka1, -1.0, 1.0)
    delta_ka2 = 2.0 * jnp.rad2deg(jnp.arcsin(arg)) - x_mesh
    doublet_mesh = x_mesh * x_mesh / (x_mesh + delta_ka2)
    idx = jnp.clip(jnp.searchsorted(x_mesh, doublet_mesh, side='left') - 1, 0, L - 2)
    t = (doublet_mesh - x_mesh[idx]) / (x_mesh[idx + 1] - x_mesh[idx])
    A = (jax.nn.one_hot(idx, L, dtype=jnp.float32) * (1.0 - t)[:, None]
         + jax.nn.one_hot(idx + 1, L, dtype=jnp.float32) * t[:, None])  # doublet = A @ y
    return A.T.astype(jnp.float32), doublet_mesh


def build_conv_toeplitz(w_int, L):
    """F.conv1d(x, w, padding='same') as out = x @ T, reproducing PyTorch's
    asymmetric 'same' padding for even kernels (left=(K-1)//2, right=K-1-left)."""
    K = w_int.shape[0]
    pad_l = (K - 1) // 2
    i = jnp.arange(L)[:, None]
    j = jnp.arange(L)[None, :]
    d = i - j + pad_l                                   # kernel tap index for (i, j)
    valid = (d >= 0) & (d < K)
    return jnp.where(valid, w_int[jnp.clip(d, 0, K - 1)], 0.0).astype(jnp.float32)


class XRDConvPallas:
    """JAX/Pallas port of XRDConv forward (doublet_enabled path)."""

    def __init__(self, kernel_size, subkernel_size, x_data, key, doublet_enabled=True):
        k1, k2 = jax.random.split(key)
        # deterministic parameter init (torch: randn * scale)
        self.instr_weight = (jax.random.normal(k1, (subkernel_size,), jnp.float32)
                             * INSTR_INIT_WEIGHT_SCALE)
        # declared in the torch module but never used in forward()
        self.lambda_weight = (jax.random.normal(k2, (DEFAULT_LAMBDA_SIZE,), jnp.float32)
                              * LAMBDA_INIT_WEIGHT_SCALE)
        self.doublet_enabled = doublet_enabled
        self.x_mesh = jnp.asarray(x_data, jnp.float32)
        L = self.x_mesh.shape[0]

        self.w_int = interpolate_instr_weight(self.instr_weight, kernel_size)
        cmat = build_conv_toeplitz(self.w_int, L)

        if doublet_enabled:
            dmat, self.doublet_mesh = build_doublet_matrix(self.x_mesh)
            # Fused operator (f32 compute at setup, stored bf16 for the kernel):
            #   out = (KA1*y + (1-KA1)*(y @ Dmat)) @ Cmat = y @ Mfused
            mfused = KA1_MULT * cmat + (1.0 - KA1_MULT) * (dmat @ cmat)
        else:
            self.doublet_mesh = None
            mfused = cmat
        self.mfused = mfused.astype(jnp.bfloat16)

    def __call__(self, data):
        return xrd_forward_pallas(data.astype(jnp.float32), self.mfused)


# ------------------------- pure-JAX reference (torch-faithful, f32) ----------

def xrd_forward_reference(data, module):
    x_mesh = module.x_mesh
    L = x_mesh.shape[0]
    y = data.astype(jnp.float32)
    if module.doublet_enabled:
        dm = module.doublet_mesh
        idx = jnp.clip(jnp.searchsorted(x_mesh, dm, side='left') - 1, 0, L - 2)
        y0 = y[0]
        slopes = (y0[1:] - y0[:-1]) / (x_mesh[1:] - x_mesh[:-1])
        doublet = y0[idx] + slopes[idx] * (dm - x_mesh[idx])
        prof = y * KA1_MULT + doublet[None, :] * (1.0 - KA1_MULT)
    else:
        prof = y
    w = module.w_int
    K = w.shape[0]
    pad_l = (K - 1) // 2
    pad_r = K - 1 - pad_l
    padded = jnp.pad(prof[0], (pad_l, pad_r))
    out = jnp.correlate(padded, w, mode='valid')   # conv1d is cross-correlation
    return out[None, :]


# ----------------------------------- main ------------------------------------

if __name__ == "__main__":
    key = jax.random.PRNGKey(0)
    k_data, k_mod = jax.random.split(key)

    # small synthetic shapes consistent with the module
    L = 256                 # length of the diffraction pattern / x_data mesh
    kernel_size = 64        # DEFAULT_FILTER_SIZE analogue
    subkernel_size = 16     # DEFAULT_SUBFILTER_SIZE analogue

    x_data = np.linspace(10.0, 80.0, L, dtype=np.float32)  # 2-theta mesh in degrees
    module = XRDConvPallas(kernel_size, subkernel_size, x_data, k_mod,
                           doublet_enabled=True)

    data = jax.random.normal(k_data, (1, L), jnp.float32)   # (C=1, L) signal

    out = jax.block_until_ready(module(data))
    ref = jax.block_until_ready(xrd_forward_reference(data, module))

    if out.shape != (1, L):
        raise AssertionError(f"bad output shape {out.shape}")
    # bf16 fused operator in the kernel vs f32 reference: tolerance has ample headroom.
    if not np.allclose(np.asarray(out), np.asarray(ref), rtol=2e-2, atol=3e-3):
        err = float(np.max(np.abs(np.asarray(out) - np.asarray(ref))))
        raise AssertionError(f"pallas kernel mismatch vs reference, max abs err={err}")

    print("KERNEL_OK")
</pallas_src>

<mosaic_0001>
module attributes {stable_mosaic.version = 11 : i64} {
  func.func @xrd_fused_kernel(%arg0: i32, %arg1: i32, %arg2: memref<8x256xbf16, #tpu.memory_space<vmem>>, %arg3: memref<256x256xbf16, #tpu.memory_space<vmem>>, %arg4: memref<8x256xf32, #tpu.memory_space<vmem>>, %arg5: memref<8x256xf32, #tpu.memory_space<vmem>>) attributes {dimension_semantics = [#tpu.dimension_semantics<parallel>, #tpu.dimension_semantics<arbitrary>], iteration_bounds = array<i64: 1, 1>, scalar_prefetch = 0 : i64, scratch_operands = 1 : i64, tpu.core_type = #tpu.core_type<tc>, window_params = [{transform_indices = @transform_0, window_bounds = array<i64: 8, 256>}, {transform_indices = @transform_1, window_bounds = array<i64: 256, 256>}, {transform_indices = @transform_2, window_bounds = array<i64: 8, 256>}]} {
    %c0_i32 = arith.constant 0 : i32
    %0 = arith.cmpi eq, %arg1, %c0_i32 : i32
    %1 = arith.extui %0 : i1 to i32
    %c0_i32_0 = arith.constant 0 : i32
    %2 = arith.cmpi ne, %1, %c0_i32_0 : i32
    scf.if %2 {
      %cst_10 = arith.constant 0.000000e+00 : f32
      %12 = vector.broadcast %cst_10 : f32 to vector<8x256xf32>
      %c0_11 = arith.constant 0 : index
      %c0_12 = arith.constant 0 : index
      %13 = vector.load %arg5[%c0_11, %c0_12] : memref<8x256xf32, #tpu.memory_space<vmem>>, vector<8x256xf32>
      tpu.vector_store %arg5[%c0_11, %c0_12], %12 {strides = array<i32>} : memref<8x256xf32, #tpu.memory_space<vmem>>, vector<8x256xf32>,
    } else {
    }
    %c0 = arith.constant 0 : index
    %c0_1 = arith.constant 0 : index
    %3 = vector.load %arg5[%c0, %c0_1] : memref<8x256xf32, #tpu.memory_space<vmem>>, vector<8x256xf32>
    %c0_2 = arith.constant 0 : index
    %c0_3 = arith.constant 0 : index
    %4 = vector.load %arg2[%c0_2, %c0_3] : memref<8x256xbf16, #tpu.memory_space<vmem>>, vector<8x256xbf16>
    %c0_4 = arith.constant 0 : index
    %c0_5 = arith.constant 0 : index
    %5 = vector.load %arg3[%c0_4, %c0_5] : memref<256x256xbf16, #tpu.memory_space<vmem>>, vector<256x256xbf16>
    %cst = arith.constant dense<0.000000e+00> : vector<8x256xf32>
    %6 = tpu.matmul %4, %5, %cst {dimension_numbers = #tpu.dot_dimension_numbers<[1], [0], [0], [1], [0, 0, 1, 1], [], []>} : vector<8x256xbf16>, vector<256x256xbf16>, vector<8x256xf32> -> vector<8x256xf32>
    %7 = arith.addf %3, %6 : vector<8x256xf32>
    %c0_6 = arith.constant 0 : index
    %c0_7 = arith.constant 0 : index
    %8 = vector.load %arg5[%c0_6, %c0_7] : memref<8x256xf32, #tpu.memory_space<vmem>>, vector<8x256xf32>
    tpu.vector_store %arg5[%c0_6, %c0_7], %7 {strides = array<i32>} : memref<8x256xf32, #tpu.memory_space<vmem>>, vector<8x256xf32>,
    %c0_i32_8 = arith.constant 0 : i32
    %9 = arith.cmpi eq, %arg1, %c0_i32_8 : i32
    %10 = arith.extui %9 : i1 to i32
    %c0_i32_9 = arith.constant 0 : i32
    %11 = arith.cmpi ne, %10, %c0_i32_9 : i32
    scf.if %11 {
      %c0_10 = arith.constant 0 : index
      %c0_11 = arith.constant 0 : index
      %12 = vector.load %arg5[%c0_10, %c0_11] : memref<8x256xf32, #tpu.memory_space<vmem>>, vector<8x256xf32>
      %c0_12 = arith.constant 0 : index
      %c0_13 = arith.constant 0 : index
      %13 = vector.load %arg4[%c0_12, %c0_13] : memref<8x256xf32, #tpu.memory_space<vmem>>, vector<8x256xf32>
      tpu.vector_store %arg4[%c0_12, %c0_13], %12 {strides = array<i32>} : memref<8x256xf32, #tpu.memory_space<vmem>>, vector<8x256xf32>,
    } else {
    }
    return
  }
  func.func @transform_0(%arg0: i32, %arg1: i32) -> (i32, i32) {
    %c0_i32 = arith.constant 0 : i32
    %c0_i32_0 = arith.constant 0 : i32
    return %c0_i32, %arg1 : i32, i32
  }
  func.func @transform_1(%arg0: i32, %arg1: i32) -> (i32, i32) {
    %c0_i32 = arith.constant 0 : i32
    return %arg1, %arg0 : i32, i32
  }
  func.func @transform_2(%arg0: i32, %arg1: i32) -> (i32, i32) {
    %c0_i32 = arith.constant 0 : i32
    %c0_i32_0 = arith.constant 0 : i32
    return %c0_i32, %arg0 : i32, i32
  }
}

</mosaic_0001>

<llo_original>
// kernel: tpu_custom_call.1
$region0: #{tpu_custom_call.1}
  #allocation0 [shape = 'u32[]', space=smem, size = 0x4, offset = 0x4, fixed_abs, tag = 'smem constant byte address 0x4 - core index']
  #allocation1 [shape = 'u32[144,128]{1,0:T(1,128)}', space=vmem, size = 0x12000, scoped, tag = 'internal scratch']
  #allocation2 [shape = 'f32[8,256]{1,0:T(8,128)}', space=vmem, size = 0x2000, scoped, tag = 'scratch operand']
  %s0 = inlined_call_operand.hbm [shape: bf16[8,256], index: 0, kind: input, shape index: {}]
  %s1 = inlined_call_operand.hbm [shape: bf16[256,256], index: 1, kind: input, shape index: {}]
  %s2 = inlined_call_operand.hbm [shape: f32[8,256], index: 2, kind: output, shape index: {}]
  %s3 = sld [smem:[#allocation0]]
  $region34: #{tpu_custom_call.1} parent=0
    _
  %s5 = ssub.s32 1, %s3
  %s6 = scalar_select 0, %s5, %s3
  $region1: #{tpu_custom_call.1} parent=0
    #allocation3 [shape = 'u8[4096]{0}', space=vmem, size = 0x1000, scoped, tag = 'input window, operand 0, single buffered']
    #allocation4 [shape = 's32[1]{0}', space=sflag, size = 0x4, scoped, tag = 'scoped memory for tpu_custom_call.1']
    #allocation5 [shape = 's32[1]{0}', space=sflag, size = 0x4, scoped, tag = 'scoped memory for tpu_custom_call.1']
    #allocation6 [shape = 'u8[131072]{0}', space=vmem, size = 0x20000, scoped, tag = 'input window, operand 1, single buffered']
    #allocation7 [shape = 's32[1]{0}', space=sflag, size = 0x4, scoped, tag = 'scoped memory for tpu_custom_call.1']
    #allocation8 [shape = 'u8[8192]{0}', space=vmem, size = 0x2000, scoped, tag = 'output window, operand 0, single buffered']
    %7 = vsyncpa [#allocation4], 0
    %8 = vsyncpa [#allocation7], 0
    %9 = vsyncpa [#allocation5], 0
    // Predicated region
    $region2: #{tpu_custom_call.1} parent=1 // pred_check
      _
    $region3: #{tpu_custom_call.1} parent=1 // pred_check_branch
      %11 = sbr.rel (0) target = $region5
    $region4: #{tpu_custom_call.1} parent=1 // pred_region
      %s13 = ssub.s32 128, 128
      %14 = vsyncadd [#allocation4], %s13
      %s16 = sshll.u32 [#allocation3], 4
      %s17 = int_to_ptr.vmem [resolvable:$true] %s16
      %19 = dma.hbm_to_vmem [thread:$0]  %s0, 128, %s17, [#allocation4]
    $region5: #{tpu_custom_call.1} parent=1 // pred_fallthru
      _
    // Predicated region
    $region6: #{tpu_custom_call.1} parent=1 // pred_check
      _
    $region7: #{tpu_custom_call.1} parent=1 // pred_check_branch
      %21 = sbr.rel (0) target = $region9
    $region8: #{tpu_custom_call.1} parent=1 // pred_region
      %s23 = ssub.s32 4096, 4096
      %24 = vsyncadd [#allocation7], %s23
      %s25 = sshll.u32 [#allocation6], 4
      %s26 = int_to_ptr.vmem [resolvable:$true] %s25
      %31 = dma.hbm_to_vmem [thread:$0]  %s1, 4096, %s26, [#allocation7], 128, 128, 8
    $region9: #{tpu_custom_call.1} parent=1 // pred_fallthru
      _
    // Predicated region
    $region10: #{tpu_custom_call.1} parent=1 // pred_check
      _
    $region11: #{tpu_custom_call.1} parent=1 // pred_check_branch
      %33 = sbr.rel (0) target = $region13
    $region12: #{tpu_custom_call.1} parent=1 // pred_region
      %34 = dma.done [#allocation4], 128
    $region13: #{tpu_custom_call.1} parent=1 // pred_fallthru
      _
    // Predicated region
    $region14: #{tpu_custom_call.1} parent=1 // pred_check
      _
    $region15: #{tpu_custom_call.1} parent=1 // pred_check_branch
      %36 = sbr.rel (0) target = $region17
    $region16: #{tpu_custom_call.1} parent=1 // pred_region
      %37 = dma.done [#allocation7], 4096
    $region17: #{tpu_custom_call.1} parent=1 // pred_fallthru
      _
    %p38 = scmp.eq.s32.totalorder 0, 0
    // Predicated region
    $region18: #{tpu_custom_call.1} parent=1 // pred_check
      %p39 = pneg %p38
    $region19: #{tpu_custom_call.1} parent=1 // pred_check_branch
      %41 = sbr.rel (%p39) target = $region21
    $region20: #{tpu_custom_call.1} parent=1 // pred_region
      %42 = vst [vmem:[#allocation2] sm:$0xff] 0.0
      %43 = vst [vmem:[#allocation2 + $0x8] sm:$0xff] 0.0
    $region21: #{tpu_custom_call.1} parent=1 // pred_fallthru
      _
    %v44 = vld [vmem:[#allocation2] sm:$0xff]
    %v45 = vld [vmem:[#allocation2 + $0x8] sm:$0xff]
    %v46 = vld [vmem:[#allocation3] sm:$0xff]
    %v47 = vld [vmem:[#allocation6] sm:$0xff]
    %v48 = vld [vmem:[#allocation6 + $0x8] sm:$0xff]
    %v49 = vld [vmem:[#allocation6 + $0x10] sm:$0xff]
    %v50 = vld [vmem:[#allocation6 + $0x18] sm:$0xff]
    %v51 = vld [vmem:[#allocation6 + $0x20] sm:$0xff]
    %v52 = vld [vmem:[#allocation6 + $0x28] sm:$0xff]
    %v53 = vld [vmem:[#allocation6 + $0x30] sm:$0xff]
    %v54 = vld [vmem:[#allocation6 + $0x38] sm:$0xff]
    %v55 = vld [vmem:[#allocation6 + $0x40] sm:$0xff]
    %v56 = vld [vmem:[#allocation6 + $0x48] sm:$0xff]
    %v57 = vld [vmem:[#allocation6 + $0x50] sm:$0xff]
    %v58 = vld [vmem:[#allocation6 + $0x58] sm:$0xff]
    %v59 = vld [vmem:[#allocation6 + $0x60] sm:$0xff]
    %v60 = vld [vmem:[#allocation6 + $0x68] sm:$0xff]
    %v61 = vld [vmem:[#allocation6 + $0x70] sm:$0xff]
    %v62 = vld [vmem:[#allocation6 + $0x78] sm:$0xff]
    %v63 = vld [vmem:[#allocation6 + $0x80] sm:$0xff]
    %v64 = vld [vmem:[#allocation6 + $0x88] sm:$0xff]
    %v65 = vld [vmem:[#allocation6 + $0x90] sm:$0xff]
    %v66 = vld [vmem:[#allocation6 + $0x98] sm:$0xff]
    %v67 = vld [vmem:[#allocation6 + $0xa0] sm:$0xff]
    %v68 = vld [vmem:[#allocation6 + $0xa8] sm:$0xff]
    %v69 = vld [vmem:[#allocation6 + $0xb0] sm:$0xff]
    %v70 = vld [vmem:[#allocation6 + $0xb8] sm:$0xff]
    %v71 = vld [vmem:[#allocation6 + $0xc0] sm:$0xff]
    %v72 = vld [vmem:[#allocation6 + $0xc8] sm:$0xff]
    %v73 = vld [vmem:[#allocation6 + $0xd0] sm:$0xff]
    %v74 = vld [vmem:[#allocation6 + $0xd8] sm:$0xff]
    %v75 = vld [vmem:[#allocation6 + $0xe0] sm:$0xff]
    %v76 = vld [vmem:[#allocation6 + $0xe8] sm:$0xff]
    %v77 = vld [vmem:[#allocation6 + $0xf0] sm:$0xff]
    %v78 = vld [vmem:[#allocation6 + $0xf8] sm:$0xff]
    %v80 = vunpack.c.l.b16 %v46
    %v81 = vunpack.c.h.b16 %v46
    %v82 = vpack.c.b16 %v80, %v80
    %v83 = vpack.c.b16 %v81, %v81
    %v118 = vunpack.c.l.b16 %v47
    %v119 = vunpack.c.h.b16 %v47
    %v120 = vunpack.c.l.b16 %v48
    %v121 = vunpack.c.h.b16 %v48
    %v122 = vunpack.c.l.b16 %v49
    %v123 = vunpack.c.h.b16 %v49
    %v124 = vunpack.c.l.b16 %v50
    %v125 = vunpack.c.h.b16 %v50
    %v126 = vunpack.c.l.b16 %v51
    %v127 = vunpack.c.h.b16 %v51
    %v128 = vunpack.c.l.b16 %v52
    %v129 = vunpack.c.h.b16 %v52
    %v130 = vunpack.c.l.b16 %v53
    %v131 = vunpack.c.h.b16 %v53
    %v132 = vunpack.c.l.b16 %v54
    %v133 = vunpack.c.h.b16 %v54
    %v134 = vunpack.c.l.b16 %v55
    %v135 = vunpack.c.h.b16 %v55
    %v136 = vunpack.c.l.b16 %v56
    %v137 = vunpack.c.h.b16 %v56
    %v138 = vunpack.c.l.b16 %v57
    %v139 = vunpack.c.h.b16 %v57
    %v140 = vunpack.c.l.b16 %v58
    %v141 = vunpack.c.h.b16 %v58
    %v142 = vunpack.c.l.b16 %v59
    %v143 = vunpack.c.h.b16 %v59
    %v144 = vunpack.c.l.b16 %v60
    %v145 = vunpack.c.h.b16 %v60
    %v146 = vunpack.c.l.b16 %v61
    %v147 = vunpack.c.h.b16 %v61
    %v148 = vunpack.c.l.b16 %v62
    %v149 = vunpack.c.h.b16 %v62
    %v150 = vunpack.c.l.b16 %v63
    %v151 = vunpack.c.h.b16 %v63
    %v152 = vunpack.c.l.b16 %v64
    %v153 = vunpack.c.h.b16 %v64
    %v154 = vunpack.c.l.b16 %v65
    %v155 = vunpack.c.h.b16 %v65
    %v156 = vunpack.c.l.b16 %v66
    %v157 = vunpack.c.h.b16 %v66
    %v158 = vunpack.c.l.b16 %v67
    %v159 = vunpack.c.h.b16 %v67
    %v160 = vunpack.c.l.b16 %v68
    %v161 = vunpack.c.h.b16 %v68
    %v162 = vunpack.c.l.b16 %v69
    %v163 = vunpack.c.h.b16 %v69
    %v164 = vunpack.c.l.b16 %v70
    %v165 = vunpack.c.h.b16 %v70
    %v166 = vunpack.c.l.b16 %v71
    %v167 = vunpack.c.h.b16 %v71
    %v168 = vunpack.c.l.b16 %v72
    %v169 = vunpack.c.h.b16 %v72
    %v170 = vunpack.c.l.b16 %v73
    %v171 = vunpack.c.h.b16 %v73
    %v172 = vunpack.c.l.b16 %v74
    %v173 = vunpack.c.h.b16 %v74
    %v174 = vunpack.c.l.b16 %v75
    %v175 = vunpack.c.h.b16 %v75
    %v176 = vunpack.c.l.b16 %v76
    %v177 = vunpack.c.h.b16 %v76
    %v178 = vunpack.c.l.b16 %v77
    %v179 = vunpack.c.h.b16 %v77
    %v180 = vunpack.c.l.b16 %v78
    %v181 = vunpack.c.h.b16 %v78
    %v182 = vpack.c.b16 %v120, %v118
    %v183 = vpack.c.b16 %v121, %v119
    %v184 = vpack.c.b16 %v124, %v122
    %v185 = vpack.c.b16 %v125, %v123
    %v186 = vpack.c.b16 %v128, %v126
    %v187 = vpack.c.b16 %v129, %v127
    %v188 = vpack.c.b16 %v132, %v130
    %v189 = vpack.c.b16 %v133, %v131
    %v190 = vpack.c.b16 %v136, %v134
    %v191 = vpack.c.b16 %v137, %v135
    %v192 = vpack.c.b16 %v140, %v138
    %v193 = vpack.c.b16 %v141, %v139
    %v194 = vpack.c.b16 %v144, %v142
    %v195 = vpack.c.b16 %v145, %v143
    %v196 = vpack.c.b16 %v148, %v146
    %v197 = vpack.c.b16 %v149, %v147
    %v198 = vpack.c.b16 %v152, %v150
    %v199 = vpack.c.b16 %v153, %v151
    %v200 = vpack.c.b16 %v156, %v154
    %v201 = vpack.c.b16 %v157, %v155
    %v202 = vpack.c.b16 %v160, %v158
    %v203 = vpack.c.b16 %v161, %v159
    %v204 = vpack.c.b16 %v164, %v162
    %v205 = vpack.c.b16 %v165, %v163
    %v206 = vpack.c.b16 %v168, %v166
    %v207 = vpack.c.b16 %v169, %v167
    %v208 = vpack.c.b16 %v172, %v170
    %v209 = vpack.c.b16 %v173, %v171
    %v210 = vpack.c.b16 %v176, %v174
    %v211 = vpack.c.b16 %v177, %v175
    %v212 = vpack.c.b16 %v180, %v178
    %v213 = vpack.c.b16 %v181, %v179
    %246 = vmatprep.subr.bf16.mxu0 %v183
    %247 = vmatpush1.bf16.msra.mxu0 %v182
    %248 = vmatprep.subr.bf16.mxu0 %v185
    %249 = vmatpush1.bf16.msra.mxu0 %v184
    %250 = vmatprep.subr.bf16.mxu0 %v187
    %251 = vmatpush1.bf16.msra.mxu0 %v186
    %252 = vmatprep.subr.bf16.mxu0 %v189
    %253 = vmatpush1.bf16.msra.mxu0 %v188
    %254 = vmatprep.subr.bf16.mxu0 %v191
    %255 = vmatpush1.bf16.msra.mxu0 %v190
    %256 = vmatprep.subr.bf16.mxu0 %v193
    %257 = vmatpush1.bf16.msra.mxu0 %v192
    %258 = vmatprep.subr.bf16.mxu0 %v195
    %259 = vmatpush1.bf16.msra.mxu0 %v194
    %260 = vmatprep.subr.bf16.mxu0 %v197
    %261 = vmatpush1.bf16.msra.mxu0 %v196
    %262 = vmatprep.subr.bf16.mxu0 %v199
    %263 = vmatpush1.bf16.msra.mxu0 %v198
    %264 = vmatprep.subr.bf16.mxu0 %v201
    %265 = vmatpush1.bf16.msra.mxu0 %v200
    %266 = vmatprep.subr.bf16.mxu0 %v203
    %267 = vmatpush1.bf16.msra.mxu0 %v202
    %268 = vmatprep.subr.bf16.mxu0 %v205
    %269 = vmatpush1.bf16.msra.mxu0 %v204
    %270 = vmatprep.subr.bf16.mxu0 %v207
    %271 = vmatpush1.bf16.msra.mxu0 %v206
    %272 = vmatprep.subr.bf16.mxu0 %v209
    %273 = vmatpush1.bf16.msra.mxu0 %v208
    %274 = vmatprep.subr.bf16.mxu0 %v211
    %275 = vmatpush1.bf16.msra.mxu0 %v210
    %276 = vmatprep.subr.bf16.mxu0 %v213
    %277 = vmatpush1.bf16.msra.mxu0 %v212
    %278 = vmatprep.mubr.bf16.mxu0 %v83
    %279 = vmatmul.mubr.bf16.gmra.mrb[0].mxu0 %v82
    %v280 = vpop.f32.mrb[0].mxu0
    %v281 = vadd.f32 0.0, %v280
    %v282 = vpop.f32.mrb[0].mxu0
    %v283 = vadd.f32 0.0, %v282
    %v284 = vpop.f32.mrb[0].mxu0
    %v285 = vpop.f32.mrb[0].mxu0
    %286 = vdwg.mxu0
    %v287 = vadd.f32 %v44, %v281
    %v288 = vadd.f32 %v45, %v283
    %289 = vst [vmem:[#allocation2] sm:$0xff] %v287
    %290 = vst [vmem:[#allocation2 + $0x8] sm:$0xff] %v288
    // Predicated region
    $region22: #{tpu_custom_call.1} parent=1 // pred_check
      %p291 = pneg %p38
    $region23: #{tpu_custom_call.1} parent=1 // pred_check_branch
      %293 = sbr.rel (%p291) target = $region25
    $region24: #{tpu_custom_call.1} parent=1 // pred_region
      %v294 = vld [vmem:[#allocation2] sm:$0xff]
      %v295 = vld [vmem:[#allocation2 + $0x8] sm:$0xff]
      %296 = vst [vmem:[#allocation8] sm:$0xff] %v294
      %297 = vst [vmem:[#allocation8 + $0x8] sm:$0xff] %v295
    $region25: #{tpu_custom_call.1} parent=1 // pred_fallthru
      _
    // Predicated region
    $region26: #{tpu_custom_call.1} parent=1 // pred_check
      _
    $region27: #{tpu_custom_call.1} parent=1 // pred_check_branch
      %299 = sbr.rel (0) target = $region29
    $region28: #{tpu_custom_call.1} parent=1 // pred_region
      %s301 = ssub.s32 256, 256
      %302 = vsyncadd [#allocation5], %s301
      %s304 = sshll.u32 [#allocation8], 4
      %s305 = int_to_ptr.vmem [resolvable:$true] %s304
      %307 = dma.vmem_to_hbm [thread:$0]  %s305, 256, %s2, [#allocation5]
    $region29: #{tpu_custom_call.1} parent=1 // pred_fallthru
      _
    // Predicated region
    $region30: #{tpu_custom_call.1} parent=1 // pred_check
      _
    $region31: #{tpu_custom_call.1} parent=1 // pred_check_branch
      %309 = sbr.rel (0) target = $region33
    $region32: #{tpu_custom_call.1} parent=1 // pred_region
      %310 = dma.done [#allocation5], 256
    $region33: #{tpu_custom_call.1} parent=1 // pred_fallthru
      _
    %311 = vsyncpa [#allocation4], 1
    %312 = vsyncpa [#allocation7], 1
    %313 = vsyncpa [#allocation5], 1

</llo_original>
